<compile_context>
chip_gen: v5e
topology: v5e:2x2
jax: 0.10.0
libtpu: 0.0.40
codegen_flags: <defaults>
</compile_context>

<pallas_src>
import functools

import jax
import jax.numpy as jnp
from jax.experimental import pallas as pl
from jax.experimental.pallas import tpu as pltpu


# ----------------------------------------------------------------------------
# Tiling helpers
# ----------------------------------------------------------------------------
def _sublane_align(dtype) -> int:
    # Packed sublane granularity: 8 for 4-byte, 16 for 2-byte, 32 for 1-byte.
    return {4: 8, 2: 16, 1: 32}.get(jnp.dtype(dtype).itemsize, 8)


def _round_up(x: int, m: int) -> int:
    return ((x + m - 1) // m) * m


def _pick_tile(dim: int, cap: int, align: int) -> int:
    """Largest usable tile <= cap: the full dim (ragged blocks are fine even
    when unaligned) or the largest align-multiple <= cap."""
    if dim <= cap:
        return dim
    return max(align, (cap // align) * align)


# ----------------------------------------------------------------------------
# Kernels
# ----------------------------------------------------------------------------
def _locscale_kernel(s_ref, m_ref, b_ref, o_ref):
    # s_ref/o_ref: (tm, tn); m_ref/b_ref: (1, tn) -> broadcast along rows.
    o_ref[...] = s_ref[...] * m_ref[...] + b_ref[...]


def _affine_resident_kernel(s_ref, mt_ref, b_ref, o_ref):
    # s_ref: (tm, F), mt_ref: (F, F) = M^T (VMEM-resident, constant block),
    # b_ref: (1, F), o_ref: (tm, F).  Single dot, no accumulator round trip.
    acc = jnp.dot(s_ref[...], mt_ref[...], preferred_element_type=jnp.float32)
    o_ref[...] = (acc + b_ref[...].astype(jnp.float32)).astype(o_ref.dtype)


def _affine_tiled_kernel(s_ref, mt_ref, b_ref, o_ref, acc_ref):
    # Fallback for very large F.  s_ref: (tm, tk), mt_ref: (tk, tj) = M^T tile
    # (canonical K-major RHS, no in-kernel transpose), b_ref: (1, tj),
    # o_ref: (tm, tj), acc_ref: f32 accumulator persisting across the K axis.
    k = pl.program_id(2)

    @pl.when(k == 0)
    def _():
        acc_ref[...] = jnp.zeros_like(acc_ref)

    acc_ref[...] += jnp.dot(s_ref[...], mt_ref[...],
                            preferred_element_type=jnp.float32)

    @pl.when(k == pl.num_programs(2) - 1)
    def _():
        o_ref[...] = (acc_ref[...] + b_ref[...].astype(jnp.float32)
                      ).astype(o_ref.dtype)


# ----------------------------------------------------------------------------
# Wrapper
# ----------------------------------------------------------------------------
@functools.partial(jax.jit,
                   static_argnames=("transform_type",
                                    "affine_resident_limit_bytes"))
def mmd_linear_adapter(S, M, b, *, transform_type: str,
                       affine_resident_limit_bytes: int = 4 << 20):
    N, F = S.shape
    dtype = S.dtype
    itemsize = jnp.dtype(dtype).itemsize
    sub = _sublane_align(dtype)

    if transform_type == "location-scale":
        # Mem-bound elementwise: large lane-dense tiles, ragged edges handled
        # by Pallas (no host pad / slice).
        tm = _pick_tile(N, 512, sub)
        tn = _pick_tile(F, max(128, 4096 // itemsize), 128)
        # TODO(synk): for F < 128 the output store is a masked vst (F/128 lane
        # utilization); a lane-dense repack would help if such F dominates.
        M2 = M.reshape(1, F)
        b2 = b.reshape(1, F)
        return pl.pallas_call(
            _locscale_kernel,
            out_shape=jax.ShapeDtypeStruct((N, F), dtype),
            grid_spec=pltpu.PrefetchScalarGridSpec(
                num_scalar_prefetch=0,
                grid=(pl.cdiv(N, tm), pl.cdiv(F, tn)),
                in_specs=[pl.BlockSpec((tm, tn), lambda i, j: (i, j)),
                          pl.BlockSpec((1, tn), lambda i, j: (0, j)),
                          pl.BlockSpec((1, tn), lambda i, j: (0, j))],
                out_specs=pl.BlockSpec((tm, tn), lambda i, j: (i, j))),
            compiler_params=pltpu.CompilerParams(
                dimension_semantics=("parallel", "parallel")),
        )(S, M2, b2)

    elif transform_type == "affine":
        Mt = M.T                      # one-time tiny F x F transpose on host
        b2 = b.reshape(1, F)

        if F * F * itemsize <= affine_resident_limit_bytes:
            # Fast path: M^T fits in VMEM -> 1-D grid over row blocks,
            # M^T/b resident, no K axis, no accumulator scratch, no padding.
            tm = _pick_tile(N, 256, sub)
            return pl.pallas_call(
                _affine_resident_kernel,
                out_shape=jax.ShapeDtypeStruct((N, F), dtype),
                grid_spec=pltpu.PrefetchScalarGridSpec(
                    num_scalar_prefetch=0,
                    grid=(pl.cdiv(N, tm),),
                    in_specs=[pl.BlockSpec((tm, F), lambda i: (i, 0)),
                              pl.BlockSpec((F, F), lambda i: (0, 0)),
                              pl.BlockSpec((1, F), lambda i: (0, 0))],
                    out_specs=pl.BlockSpec((tm, F), lambda i: (i, 0))),
                compiler_params=pltpu.CompilerParams(
                    dimension_semantics=("parallel",)),
            )(S, Mt, b2)

        # Large-F fallback: MXU-shaped 3-D tiling, K last/"arbitrary".
        # Only the contraction (K) axis is zero-padded -- required so that the
        # ragged last K block does not mix garbage into valid output rows.
        tm = _pick_tile(N, 256, sub)
        tj = _pick_tile(F, 256, 128)
        tk = _pick_tile(F, 512, 128)
        Kp = _round_up(F, tk)
        Sk = S if Kp == F else jnp.pad(S, ((0, 0), (0, Kp - F)))
        Mtk = Mt if Kp == F else jnp.pad(Mt, ((0, Kp - F), (0, 0)))
        return pl.pallas_call(
            _affine_tiled_kernel,
            out_shape=jax.ShapeDtypeStruct((N, F), dtype),
            grid_spec=pltpu.PrefetchScalarGridSpec(
                num_scalar_prefetch=0,
                grid=(pl.cdiv(N, tm), pl.cdiv(F, tj), Kp // tk),
                in_specs=[pl.BlockSpec((tm, tk), lambda i, j, k: (i, k)),
                          pl.BlockSpec((tk, tj), lambda i, j, k: (k, j)),
                          pl.BlockSpec((1, tj), lambda i, j, k: (0, j))],
                out_specs=pl.BlockSpec((tm, tj), lambda i, j, k: (i, j)),
                scratch_shapes=[pltpu.VMEM((tm, tj), jnp.float32)]),
            compiler_params=pltpu.CompilerParams(
                dimension_semantics=("parallel", "parallel", "arbitrary")),
        )(Sk, Mtk, b2)

    else:
        raise ValueError(f"invalid transform_type:{transform_type}")


# ----------------------------------------------------------------------------
# Deterministic parameter construction (mirrors reset_parameters)
# ----------------------------------------------------------------------------
def init_params(transform_type: str, num_feats: int, dtype=jnp.float32):
    if transform_type == "location-scale":
        M = jnp.ones((num_feats,), dtype=dtype)
        b = jnp.zeros((num_feats,), dtype=dtype)
    elif transform_type == "affine":
        M = jnp.eye(num_feats, dtype=dtype)
        b = jnp.zeros((num_feats,), dtype=dtype)
    else:
        raise ValueError(f"invalid transform_type:{transform_type}")
    return M, b


# ----------------------------------------------------------------------------
# Main
# ----------------------------------------------------------------------------
if __name__ == "__main__":
    key = jax.random.PRNGKey(0)
    kS, kM, kMa, kb, kS2, kS3, kM3, kb3 = jax.random.split(key, 8)
    N, F = 8, 32  # small shapes: 8 samples, 32 features
    S = jax.random.normal(kS, (N, F), dtype=jnp.float32)

    # --- location-scale, default (identity) init -----------------------------
    M_ls, b_ls = init_params("location-scale", F)
    out_ls = mmd_linear_adapter(S, M_ls, b_ls, transform_type="location-scale")
    jax.block_until_ready(out_ls)
    ref_ls = S * M_ls.reshape(1, -1) + b_ls.reshape(1, -1)
    assert jnp.allclose(out_ls, ref_ls, atol=1e-5), "location-scale mismatch"

    # --- location-scale, non-trivial params ----------------------------------
    M_ls2 = jax.random.normal(kM, (F,), dtype=jnp.float32)
    b_ls2 = jax.random.normal(kb, (F,), dtype=jnp.float32)
    out_ls2 = mmd_linear_adapter(S, M_ls2, b_ls2, transform_type="location-scale")
    jax.block_until_ready(out_ls2)
    ref_ls2 = S * M_ls2.reshape(1, -1) + b_ls2.reshape(1, -1)
    assert jnp.allclose(out_ls2, ref_ls2, atol=1e-5), "location-scale mismatch (rand)"

    # --- location-scale, ragged row blocks (N=600, no host padding) ----------
    S_big = jax.random.normal(kS2, (600, F), dtype=jnp.float32)
    out_big = mmd_linear_adapter(S_big, M_ls2, b_ls2,
                                 transform_type="location-scale")
    jax.block_until_ready(out_big)
    ref_big = S_big * M_ls2.reshape(1, -1) + b_ls2.reshape(1, -1)
    assert jnp.allclose(out_big, ref_big, atol=1e-5), "location-scale mismatch (ragged)"

    # --- affine, default (identity) init --------------------------------------
    M_af, b_af = init_params("affine", F)
    out_af = mmd_linear_adapter(S, M_af, b_af, transform_type="affine")
    jax.block_until_ready(out_af)
    ref_af = S @ M_af.T + b_af.reshape(1, -1)
    assert jnp.allclose(out_af, ref_af, atol=1e-5), "affine mismatch"

    # --- affine, non-trivial params (resident fast path) ----------------------
    M_af2 = jax.random.normal(kMa, (F, F), dtype=jnp.float32)
    out_af2 = mmd_linear_adapter(S, M_af2, b_ls2, transform_type="affine")
    jax.block_until_ready(out_af2)
    ref_af2 = S @ M_af2.T + b_ls2.reshape(1, -1)
    assert jnp.allclose(out_af2, ref_af2, atol=1e-4, rtol=1e-4), "affine mismatch (rand)"

    # --- affine, ragged rows + unaligned F (N=300, F=160) ---------------------
    F3 = 160
    S3 = jax.random.normal(kS3, (300, F3), dtype=jnp.float32)
    M3 = jax.random.normal(kM3, (F3, F3), dtype=jnp.float32)
    b3 = jax.random.normal(kb3, (F3,), dtype=jnp.float32)
    out3 = mmd_linear_adapter(S3, M3, b3, transform_type="affine")
    jax.block_until_ready(out3)
    ref3 = S3 @ M3.T + b3.reshape(1, -1)
    assert jnp.allclose(out3, ref3, atol=2e-4, rtol=1e-4), "affine mismatch (ragged)"

    # --- affine, force the tiled (large-F) fallback for coverage --------------
    out3_t = mmd_linear_adapter(S3, M3, b3, transform_type="affine",
                                affine_resident_limit_bytes=0)
    jax.block_until_ready(out3_t)
    assert jnp.allclose(out3_t, ref3, atol=2e-4, rtol=1e-4), "affine mismatch (tiled)"

    print("KERNEL_OK")
</pallas_src>

<mosaic_0001>
module attributes {stable_mosaic.version = 11 : i64} {
  func.func @_locscale_kernel(%arg0: i32, %arg1: i32, %arg2: memref<8x32xf32, #tpu.memory_space<vmem>>, %arg3: memref<1x32xf32, #tpu.memory_space<vmem>>, %arg4: memref<1x32xf32, #tpu.memory_space<vmem>>, %arg5: memref<8x32xf32, #tpu.memory_space<vmem>>) attributes {dimension_semantics = [#tpu.dimension_semantics<parallel>, #tpu.dimension_semantics<parallel>], iteration_bounds = array<i64: 1, 1>, scalar_prefetch = 0 : i64, scratch_operands = 0 : i64, tpu.core_type = #tpu.core_type<tc>, window_params = [{transform_indices = @transform_0, window_bounds = array<i64: 8, 32>}, {transform_indices = @transform_1, window_bounds = array<i64: 1, 32>}, {transform_indices = @transform_2, window_bounds = array<i64: 1, 32>}, {transform_indices = @transform_3, window_bounds = array<i64: 8, 32>}]} {
    %c0 = arith.constant 0 : index
    %c0_0 = arith.constant 0 : index
    %0 = vector.load %arg2[%c0, %c0_0] : memref<8x32xf32, #tpu.memory_space<vmem>>, vector<8x32xf32>
    %c0_1 = arith.constant 0 : index
    %c0_2 = arith.constant 0 : index
    %1 = vector.load %arg3[%c0_1, %c0_2] : memref<1x32xf32, #tpu.memory_space<vmem>>, vector<1x32xf32>
    %2 = vector.broadcast %1 : vector<1x32xf32> to vector<8x32xf32>
    %3 = arith.mulf %0, %2 : vector<8x32xf32>
    %c0_3 = arith.constant 0 : index
    %c0_4 = arith.constant 0 : index
    %4 = vector.load %arg4[%c0_3, %c0_4] : memref<1x32xf32, #tpu.memory_space<vmem>>, vector<1x32xf32>
    %5 = vector.broadcast %4 : vector<1x32xf32> to vector<8x32xf32>
    %6 = arith.addf %3, %5 : vector<8x32xf32>
    %c0_5 = arith.constant 0 : index
    %c0_6 = arith.constant 0 : index
    %7 = vector.load %arg5[%c0_5, %c0_6] : memref<8x32xf32, #tpu.memory_space<vmem>>, vector<8x32xf32>
    tpu.vector_store %arg5[%c0_5, %c0_6], %6 {strides = array<i32>} : memref<8x32xf32, #tpu.memory_space<vmem>>, vector<8x32xf32>,
    return
  }
  func.func @transform_0(%arg0: i32, %arg1: i32) -> (i32, i32) {
    %c0_i32 = arith.constant 0 : i32
    return %arg0, %arg1 : i32, i32
  }
  func.func @transform_1(%arg0: i32, %arg1: i32) -> (i32, i32) {
    %c0_i32 = arith.constant 0 : i32
    %c0_i32_0 = arith.constant 0 : i32
    return %c0_i32, %arg1 : i32, i32
  }
  func.func @transform_2(%arg0: i32, %arg1: i32) -> (i32, i32) {
    %c0_i32 = arith.constant 0 : i32
    %c0_i32_0 = arith.constant 0 : i32
    return %c0_i32, %arg1 : i32, i32
  }
  func.func @transform_3(%arg0: i32, %arg1: i32) -> (i32, i32) {
    %c0_i32 = arith.constant 0 : i32
    return %arg0, %arg1 : i32, i32
  }
}

</mosaic_0001>

<llo_original>
// kernel: mmd_linear_adapter.1
$region0: #{mmd_linear_adapter.1}
  #allocation0 [shape = 'u32[]', space=smem, size = 0x4, offset = 0x4, fixed_abs, tag = 'smem constant byte address 0x4 - core index']
  #allocation1 [shape = 'u32[72,128]{1,0:T(1,128)}', space=vmem, size = 0x9000, scoped, tag = 'internal scratch']
  %s0 = inlined_call_operand.hbm [shape: f32[8,32], index: 0, kind: input, shape index: {}]
  %s1 = inlined_call_operand.vmem [shape: f32[1,32], index: 1, kind: input, shape index: {}]
  %s2 = inlined_call_operand.vmem [shape: f32[1,32], index: 2, kind: input, shape index: {}]
  %s3 = inlined_call_operand.hbm [shape: f32[8,32], index: 3, kind: output, shape index: {}]
  %s4 = sld [smem:[#allocation0]]
  $region26: #{mmd_linear_adapter.1} parent=0
    _
  %s6 = ssub.s32 1, %s4
  %s7 = scalar_select 0, %s6, %s4
  $region1: #{mmd_linear_adapter.1} parent=0
    #allocation2 [shape = 'u8[4096]{0}', space=vmem, size = 0x1000, scoped, tag = 'input window, operand 0, single buffered']
    #allocation3 [shape = 's32[1]{0}', space=sflag, size = 0x4, scoped, tag = 'scoped memory for mmd_linear_adapter.1']
    #allocation4 [shape = 's32[1]{0}', space=sflag, size = 0x4, scoped, tag = 'scoped memory for mmd_linear_adapter.1']
    #allocation5 [shape = 'u8[4096]{0}', space=vmem, size = 0x1000, scoped, tag = 'output window, operand 0, single buffered']
    %8 = vsyncpa [#allocation3], 0
    %9 = vsyncpa [#allocation4], 0
    // Predicated region
    $region2: #{mmd_linear_adapter.1} parent=1 // pred_check
      _
    $region3: #{mmd_linear_adapter.1} parent=1 // pred_check_branch
      %11 = sbr.rel (0) target = $region5
    $region4: #{mmd_linear_adapter.1} parent=1 // pred_region
      %13 = vsyncadd [#allocation3], 0
      %s15 = sshll.u32 %s0, 4
      %s16 = int_to_ptr.hbm [resolvable:$true] %s15
      %s17 = sshll.u32 [#allocation2], 4
      %s18 = int_to_ptr.vmem [resolvable:$true] %s17
      %20 = dma.hbm_to_vmem [thread:$0]  %s16, 128, %s18, [#allocation3]
    $region5: #{mmd_linear_adapter.1} parent=1 // pred_fallthru
      _
    // Predicated region
    $region6: #{mmd_linear_adapter.1} parent=1 // pred_check
      _
    $region7: #{mmd_linear_adapter.1} parent=1 // pred_check_branch
      %22 = sbr.rel (0) target = $region9
    $region8: #{mmd_linear_adapter.1} parent=1 // pred_region
      _
    $region9: #{mmd_linear_adapter.1} parent=1 // pred_fallthru
      _
    // Predicated region
    $region10: #{mmd_linear_adapter.1} parent=1 // pred_check
      _
    $region11: #{mmd_linear_adapter.1} parent=1 // pred_check_branch
      %24 = sbr.rel (0) target = $region13
    $region12: #{mmd_linear_adapter.1} parent=1 // pred_region
      _
    $region13: #{mmd_linear_adapter.1} parent=1 // pred_fallthru
      _
    // Predicated region
    $region14: #{mmd_linear_adapter.1} parent=1 // pred_check
      _
    $region15: #{mmd_linear_adapter.1} parent=1 // pred_check_branch
      %26 = sbr.rel (0) target = $region17
    $region16: #{mmd_linear_adapter.1} parent=1 // pred_region
      %28 = dma.done [#allocation3], 128
    $region17: #{mmd_linear_adapter.1} parent=1 // pred_fallthru
      _
    %v29 = vld [vmem:[#allocation2] sm:$0xff]
    %v30 = vld [vmem:[%s1] sm:$0x1]
    %v32 = vperm.slane %v30, 0
    %v34 = vmul.f32 %v29, %v32
    %v35 = vld [vmem:[%s2] sm:$0x1]
    %v37 = vperm.slane %v35, 0
    %v39 = vadd.f32 %v34, %v37
    %vm40 = vcmask 261120
    %41 = vst.msk [vmem:[#allocation5] sm:$0xff] %vm40, %v39
    // Predicated region
    $region18: #{mmd_linear_adapter.1} parent=1 // pred_check
      _
    $region19: #{mmd_linear_adapter.1} parent=1 // pred_check_branch
      %43 = sbr.rel (0) target = $region21
    $region20: #{mmd_linear_adapter.1} parent=1 // pred_region
      %45 = vsyncadd [#allocation4], 0
      %s47 = sshll.u32 [#allocation5], 4
      %s48 = int_to_ptr.vmem [resolvable:$true] %s47
      %s49 = sshll.u32 %s3, 4
      %s50 = int_to_ptr.hbm [resolvable:$true] %s49
      %52 = dma.vmem_to_hbm [thread:$0]  %s48, 128, %s50, [#allocation4]
    $region21: #{mmd_linear_adapter.1} parent=1 // pred_fallthru
      _
    // Predicated region
    $region22: #{mmd_linear_adapter.1} parent=1 // pred_check
      _
    $region23: #{mmd_linear_adapter.1} parent=1 // pred_check_branch
      %54 = sbr.rel (0) target = $region25
    $region24: #{mmd_linear_adapter.1} parent=1 // pred_region
      %56 = dma.done [#allocation4], 128
    $region25: #{mmd_linear_adapter.1} parent=1 // pred_fallthru
      _
    %57 = vsyncpa [#allocation3], 1
    %58 = vsyncpa [#allocation4], 1

</llo_original>
